<compile_context>
chip_gen: v5e
topology: v5e:2x2
jax: 0.10.0
libtpu: 0.0.40
codegen_flags: <defaults>
</compile_context>

<pallas_src>
import jax
import jax.numpy as jnp
from jax import lax
from jax.experimental import pallas as pl
from jax.experimental.pallas import tpu as pltpu


def gather_mean_kernel(idx_ref, emb_ref, out_ref, gbuf):
    """Gather C*B rows of the VMEM-resident table, renorm (max_norm=1), mean over C."""
    CB, Epad = gbuf.shape
    B = out_ref.shape[0]
    C = CB // B

    # Row gather: idx_ref is a 1-D SMEM array ordered k = c*B + b.
    def gather_row(k, carry):
        r = idx_ref[k]                                    # scalar index from SMEM
        gbuf[pl.ds(k, 1), :] = emb_ref[pl.ds(r, 1), :]    # VMEM -> VMEM dynamic slice
        return carry

    lax.fori_loop(0, CB, gather_row, 0)

    rows = gbuf[...]                                      # (C*B, Epad) f32
    # nn.Embedding(max_norm=1): scale = 1 / (norm + 1e-7) where norm > 1
    # (padded lanes are zero, so the norm over Epad equals the norm over E).
    ss = jnp.sum(rows * rows, axis=1, keepdims=True)
    norm = jnp.sqrt(ss)
    inv = pl.reciprocal(norm + 1e-7, approx=True)         # EUP slot, VALU-free
    rows = rows * jnp.where(norm > 1.0, inv, 1.0)

    # Context mean: rows [c*B:(c+1)*B] hold context position c for all batches.
    acc = jnp.zeros((B, Epad), jnp.float32)
    for c in range(C):
        acc = acc + rows[c * B:(c + 1) * B, :]
    out_ref[...] = (acc * (1.0 / C)).astype(out_ref.dtype)


def linear_kernel(x_ref, w_ref, b_ref, out_ref):
    """out = x @ W^T + b for one vocab tile; W stays in native (V, E) layout (bf16)."""
    y = lax.dot_general(
        x_ref[...], w_ref[...],
        dimension_numbers=(((1,), (1,)), ((), ())),       # contract E against E
        preferred_element_type=jnp.float32,
    )                                                     # (B, TN), f32 accumulate
    out_ref[...] = y + b_ref[...]


def _pick_v_tile(V):
    # Prefer >= 2 grid steps so the "parallel" vocab axis can split across
    # v7x's two TensorCores; tile stays a multiple of 128 lanes.
    for t in (2048, 1024, 512, 256, 128):
        if V % t == 0 and V // t >= 2:
            return t
    for t in (2048, 1024, 512, 256, 128):
        if V % t == 0:
            return t
    return V   # small / odd vocab: single full-width tile


def cbow_forward(inputs_, emb, w, b):
    """inputs_: (B, C) int32; emb: (V, E); w: (V, E) PyTorch layout; b: (V,)."""
    B, C = inputs_.shape
    V, E = emb.shape
    Epad = ((E + 127) // 128) * 128
    pad_e = Epad - E

    # One-time wrapper-side layout work (lane-dense E, bf16 weight stream).
    emb_pad = jnp.pad(emb.astype(jnp.float32), ((0, 0), (0, pad_e)))
    w_bf16 = jnp.pad(w, ((0, 0), (0, pad_e))).astype(jnp.bfloat16)
    bias2 = b.reshape(1, V).astype(jnp.float32)
    idx_flat = inputs_.T.reshape(C * B).astype(jnp.int32)   # ordering: k = c*B + b

    # TODO(synk): embedding tables bigger than a few MiB need a streamed /
    # double-buffered HBM gather path instead of the VMEM-resident table.
    table_bytes = V * Epad * 4
    assert table_bytes <= 8 * 1024 * 1024, "embedding table too large for VMEM-resident gather"

    # Stage 1: gather + renorm + context mean -> (B, Epad) bf16.
    mean_emb = pl.pallas_call(
        gather_mean_kernel,
        out_shape=jax.ShapeDtypeStruct((B, Epad), jnp.bfloat16),
        grid_spec=pltpu.PrefetchScalarGridSpec(
            num_scalar_prefetch=1,                                    # idx_flat -> SMEM
            grid=(1,),
            in_specs=[pl.BlockSpec((V, Epad), lambda i, idx: (0, 0))],  # table resident in VMEM
            out_specs=pl.BlockSpec((B, Epad), lambda i, idx: (0, 0)),
            scratch_shapes=[pltpu.VMEM((C * B, Epad), jnp.float32)],
        ),
        compiler_params=pltpu.CompilerParams(
            dimension_semantics=("arbitrary",)),
    )(idx_flat, emb_pad)

    # Stage 2: linear over vocab tiles (parallel grid, native bf16 weight layout).
    TN = _pick_v_tile(V)
    out = pl.pallas_call(
        linear_kernel,
        out_shape=jax.ShapeDtypeStruct((B, V), jnp.float32),
        grid_spec=pltpu.PrefetchScalarGridSpec(
            num_scalar_prefetch=0,
            grid=(V // TN,),
            in_specs=[
                pl.BlockSpec((B, Epad), lambda j: (0, 0)),
                pl.BlockSpec((TN, Epad), lambda j: (j, 0)),
                pl.BlockSpec((1, TN), lambda j: (0, j)),
            ],
            out_specs=pl.BlockSpec((B, TN), lambda j: (0, j)),
        ),
        compiler_params=pltpu.CompilerParams(
            dimension_semantics=("parallel",)),
    )(mean_emb, w_bf16, bias2)
    return out


if __name__ == "__main__":
    vocab_size = 128
    embedding_size = 64
    batch = 8
    context = 4

    key = jax.random.PRNGKey(0)
    k_emb, k_w, k_b, k_idx = jax.random.split(key, 4)

    # nn.Embedding default init: N(0, 1)
    emb = jax.random.normal(k_emb, (vocab_size, embedding_size), jnp.float32)
    # nn.Linear default init: U(-1/sqrt(in), 1/sqrt(in))
    bound = 1.0 / (embedding_size ** 0.5)
    w = jax.random.uniform(k_w, (vocab_size, embedding_size), jnp.float32,
                           minval=-bound, maxval=bound)
    b = jax.random.uniform(k_b, (vocab_size,), jnp.float32,
                           minval=-bound, maxval=bound)

    inputs_ = jax.random.randint(k_idx, (batch, context), 0, vocab_size,
                                 dtype=jnp.int32)

    out = cbow_forward(inputs_, emb, w, b)
    jax.block_until_ready(out)

    assert out.shape == (batch, vocab_size)
    assert out.dtype == jnp.float32

    # Plain-JAX reference (loose tolerance: bf16 MXU operands, f32 accumulate).
    g = emb[inputs_]                                           # (B, C, E)
    n = jnp.linalg.norm(g, axis=-1, keepdims=True)
    g = jnp.where(n > 1.0, g / (n + 1e-7), g)
    ref = g.mean(axis=1) @ w.T + b
    assert jnp.allclose(out, ref, atol=2e-2, rtol=2e-2)

    print("KERNEL_OK")
</pallas_src>

<mosaic_0001>
module attributes {stable_mosaic.version = 11 : i64} {
  func.func @gather_mean_kernel(%arg0: i32, %arg1: memref<32xi32, #tpu.memory_space<smem>>, %arg2: memref<128x128xf32, #tpu.memory_space<vmem>>, %arg3: memref<8x128xbf16, #tpu.memory_space<vmem>>, %arg4: memref<32x128xf32, #tpu.memory_space<vmem>>) attributes {dimension_semantics = [#tpu.dimension_semantics<arbitrary>], iteration_bounds = array<i64: 1>, scalar_prefetch = 1 : i64, scratch_operands = 1 : i64, tpu.core_type = #tpu.core_type<tc>, window_params = [{pipeline_mode = #tpu.pipeline_mode<synchronous>, transform_indices = @transform_0, window_bounds = array<i64: 128, 128>}, {pipeline_mode = #tpu.pipeline_mode<synchronous>, transform_indices = @transform_1, window_bounds = array<i64: 8, 128>}]} {
    %c0_i32 = arith.constant 0 : i32
    %c32_i32 = arith.constant 32 : i32
    %0 = arith.addi %c0_i32, %c32_i32 : i32
    %c1_i32 = arith.constant 1 : i32
    scf.for %arg5 = %c0_i32 to %0 step %c1_i32  : i32 {
      %28 = arith.index_cast %arg5 : i32 to index
      %29 = memref.load %arg1[%28] : memref<32xi32, #tpu.memory_space<smem>>
      %30 = arith.index_cast %29 : i32 to index
      %c0_9 = arith.constant 0 : index
      %31 = vector.load %arg2[%30, %c0_9] : memref<128x128xf32, #tpu.memory_space<vmem>>, vector<1x128xf32>
      %32 = arith.index_cast %arg5 : i32 to index
      %c0_10 = arith.constant 0 : index
      %33 = vector.load %arg4[%32, %c0_10] : memref<32x128xf32, #tpu.memory_space<vmem>>, vector<1x128xf32>
      tpu.vector_store %arg4[%32, %c0_10], %31 {strides = array<i32>} : memref<32x128xf32, #tpu.memory_space<vmem>>, vector<1x128xf32>,
    }
    %c32_i32_0 = arith.constant 32 : i32
    %c0 = arith.constant 0 : index
    %c0_1 = arith.constant 0 : index
    %1 = vector.load %arg4[%c0, %c0_1] : memref<32x128xf32, #tpu.memory_space<vmem>>, vector<32x128xf32>
    %2 = arith.mulf %1, %1 : vector<32x128xf32>
    %cst = arith.constant dense<0.000000e+00> : vector<32xf32>
    %3 = vector.multi_reduction <add>, %2, %cst [1] : vector<32x128xf32> to vector<32xf32>
    %4 = vector.shape_cast %3 : vector<32xf32> to vector<32x1xf32>
    %5 = math.sqrt %4 : vector<32x1xf32>
    %cst_2 = arith.constant 1.000000e-07 : f32
    %6 = vector.broadcast %cst_2 : f32 to vector<32x1xf32>
    %7 = arith.addf %5, %6 : vector<32x1xf32>
    %8 = tpu.reciprocal %7 {approx = true} : vector<32x1xf32> -> vector<32x1xf32>
    %cst_3 = arith.constant 1.000000e+00 : f32
    %9 = vector.broadcast %cst_3 : f32 to vector<32x1xf32>
    %10 = arith.cmpf ogt, %5, %9 : vector<32x1xf32>
    %cst_4 = arith.constant 1.000000e+00 : f32
    %11 = vector.broadcast %cst_4 : f32 to vector<32x1xf32>
    %12 = arith.select %10, %8, %11 : vector<32x1xi1>, vector<32x1xf32>
    %13 = vector.broadcast %12 : vector<32x1xf32> to vector<32x128xf32>
    %14 = arith.mulf %1, %13 : vector<32x128xf32>
    %cst_5 = arith.constant 0.000000e+00 : f32
    %15 = vector.broadcast %cst_5 : f32 to vector<8x128xf32>
    %16 = vector.extract_strided_slice %14 {offsets = [0, 0], sizes = [8, 128], strides = [1, 1]} : vector<32x128xf32> to vector<8x128xf32>
    %17 = arith.addf %15, %16 : vector<8x128xf32>
    %18 = vector.extract_strided_slice %14 {offsets = [8, 0], sizes = [8, 128], strides = [1, 1]} : vector<32x128xf32> to vector<8x128xf32>
    %19 = arith.addf %17, %18 : vector<8x128xf32>
    %20 = vector.extract_strided_slice %14 {offsets = [16, 0], sizes = [8, 128], strides = [1, 1]} : vector<32x128xf32> to vector<8x128xf32>
    %21 = arith.addf %19, %20 : vector<8x128xf32>
    %22 = vector.extract_strided_slice %14 {offsets = [24, 0], sizes = [8, 128], strides = [1, 1]} : vector<32x128xf32> to vector<8x128xf32>
    %23 = arith.addf %21, %22 : vector<8x128xf32>
    %cst_6 = arith.constant 2.500000e-01 : f32
    %24 = vector.broadcast %cst_6 : f32 to vector<8x128xf32>
    %25 = arith.mulf %23, %24 : vector<8x128xf32>
    %26 = arith.truncf %25 : vector<8x128xf32> to vector<8x128xbf16>
    %c0_7 = arith.constant 0 : index
    %c0_8 = arith.constant 0 : index
    %27 = vector.load %arg3[%c0_7, %c0_8] : memref<8x128xbf16, #tpu.memory_space<vmem>>, vector<8x128xbf16>
    tpu.vector_store %arg3[%c0_7, %c0_8], %26 {strides = array<i32>} : memref<8x128xbf16, #tpu.memory_space<vmem>>, vector<8x128xbf16>,
    return
  }
  func.func @transform_0(%arg0: i32, %arg1: memref<32xi32, #tpu.memory_space<smem>>) -> (i32, i32) {
    %c0_i32 = arith.constant 0 : i32
    %c0_i32_0 = arith.constant 0 : i32
    %c0_i32_1 = arith.constant 0 : i32
    return %c0_i32, %c0_i32_0 : i32, i32
  }
  func.func @transform_1(%arg0: i32, %arg1: memref<32xi32, #tpu.memory_space<smem>>) -> (i32, i32) {
    %c0_i32 = arith.constant 0 : i32
    %c0_i32_0 = arith.constant 0 : i32
    %c0_i32_1 = arith.constant 0 : i32
    return %c0_i32, %c0_i32_0 : i32, i32
  }
}

</mosaic_0001>

<llo_original>
// kernel: tpu_custom_call.1
$region0: #{tpu_custom_call.1}
  #allocation0 [shape = 'u32[]', space=smem, size = 0x4, offset = 0x4, fixed_abs, tag = 'smem constant byte address 0x4 - core index']
  #allocation1 [shape = 'u32[72,128]{1,0:T(1,128)}', space=vmem, size = 0x9000, scoped, tag = 'internal scratch']
  #allocation2 [shape = 'f32[32,128]{1,0:T(8,128)}', space=vmem, size = 0x4000, scoped, tag = 'scratch operand']
  #allocation3 [shape = 's32[1]{0}', space=sflag, size = 0x4, scoped, tag = 'scoped memory for tpu_custom_call.1']
  #allocation4 [shape = 'u8[512]{0}', space=smem, size = 0x200, scoped, tag = 'prefetched SMEM operand 0']
  %s0 = inlined_call_operand.hbm [shape: s32[32], index: 0, kind: input, shape index: {}]
  %s1 = inlined_call_operand.hbm [shape: f32[128,128], index: 1, kind: input, shape index: {}]
  %s2 = inlined_call_operand.hbm [shape: bf16[8,128], index: 2, kind: output, shape index: {}]
  %s3 = sld [smem:[#allocation0]]
  $region25: #{tpu_custom_call.1} parent=0
    _
  %s5 = ssub.s32 1, %s3
  %s6 = scalar_select 0, %s5, %s3
  %s8 = sshll.u32 %s0, 4
  %s9 = int_to_ptr.hbm [resolvable:$true] %s8
  %11 = dma.hbm_to_smem %s9, 16, [#allocation4], [#allocation3]
  %13 = dma.done [#allocation3], 16
  %14 = sfence
  $region1: #{tpu_custom_call.1} parent=0
    #allocation5 [shape = 'u8[65536]{0}', space=vmem, size = 0x10000, scoped, tag = 'input window, operand 1, single buffered']
    #allocation6 [shape = 's32[1]{0}', space=sflag, size = 0x4, scoped, tag = 'scoped memory for tpu_custom_call.1']
    #allocation7 [shape = 's32[1]{0}', space=sflag, size = 0x4, scoped, tag = 'scoped memory for tpu_custom_call.1']
    #allocation8 [shape = 'u8[2048]{0}', space=vmem, size = 0x800, scoped, tag = 'output window, operand 0, single buffered']
    %15 = vsyncpa [#allocation6], 0
    %16 = vsyncpa [#allocation7], 0
    // Predicated region
    $region2: #{tpu_custom_call.1} parent=1 // pred_check
      _
    $region3: #{tpu_custom_call.1} parent=1 // pred_check_branch
      %18 = sbr.rel (0) target = $region5
    $region4: #{tpu_custom_call.1} parent=1 // pred_region
      %20 = vsyncadd [#allocation6], 0
      %s21 = sshll.u32 %s1, 4
      %s22 = int_to_ptr.hbm [resolvable:$true] %s21
      %s23 = sshll.u32 [#allocation5], 4
      %s24 = int_to_ptr.vmem [resolvable:$true] %s23
      %29 = dma.hbm_to_vmem [thread:$0]  %s22, 2048, %s24, [#allocation6], 128, 128, 8
    $region5: #{tpu_custom_call.1} parent=1 // pred_fallthru
      _
    // Predicated region
    $region6: #{tpu_custom_call.1} parent=1 // pred_check
      _
    $region7: #{tpu_custom_call.1} parent=1 // pred_check_branch
      %31 = sbr.rel (0) target = $region9
    $region8: #{tpu_custom_call.1} parent=1 // pred_region
      %33 = dma.done [#allocation6], 2048
    $region9: #{tpu_custom_call.1} parent=1 // pred_fallthru
      _
    loop: start=0, step=1, limit=32
    $region10: #{tpu_custom_call.1} parent=1 // loop_pre_header
      _
    $region11: #{tpu_custom_call.1} parent=1 // loop_header
      %s35 = sphi 0, %s39
      %p36 = scmp.ge.s32.totalorder %s35, 32
    $region12: #{tpu_custom_call.1} parent=1 // loop_header_branch
      %38 = sbr.rel (%p36) target = $region16
    $region13: #{tpu_custom_call.1} parent=1 // loop_body
      %s40 = sld [smem:[#allocation4 + %s35]]
      %s41 = scalar_lea.vmem [#allocation5], %s40
      %v42 = vld [vmem:[%s41] sm:$0x1]
      %s43 = scalar_lea.vmem [#allocation2], %s35
      %44 = vst [vmem:[%s43] sm:$0x1] %v42
    $region14: #{tpu_custom_call.1} parent=1 // loop_footer
      %s39 = sadd.s32 1, %s35
    $region15: #{tpu_custom_call.1} parent=1 // loop_footer_branch
      %34 = sbr.rel target = $region11
    $region16: #{tpu_custom_call.1} parent=1 // loop_exit
      _
    %v45 = vld [vmem:[#allocation2] sm:$0xff]
    %v46 = vld [vmem:[#allocation2 + $0x8] sm:$0xff]
    %v47 = vld [vmem:[#allocation2 + $0x10] sm:$0xff]
    %v48 = vld [vmem:[#allocation2 + $0x18] sm:$0xff]
    %v49 = vmul.f32 %v45, %v45
    %v50 = vmul.f32 %v46, %v46
    %v51 = vmul.f32 %v47, %v47
    %v52 = vmul.f32 %v48, %v48
    %53 = vadd.xlane.f32.xlu0 %v49
    %v54 = vpop.xlane.xlu0 %53
    %55 = vadd.xlane.f32.xlu0 %v50
    %v56 = vpop.xlane.xlu0 %55
    %57 = vadd.xlane.f32.xlu0 %v51
    %v58 = vpop.xlane.xlu0 %57
    %59 = vadd.xlane.f32.xlu0 %v52
    %v60 = vpop.xlane.xlu0 %59
    %v61 = vrsqrt.pop %v54
    %v62 = vmul.f32 %v61, %v54
    %v63 = vmul.f32 %v62, %v61
    %v64 = vmul.f32 0.5, %v63
    %v65 = vsub.f32 1.5, %v64
    %v66 = vmul.f32 %v61, %v65
    %v67 = vmul.f32 %v54, %v66
    %vm68 = vcmp.eq.f32.partialorder %v54, inf
    %v69 = vsel %vm68, %v54, %v67
    %vm70 = vcmp.eq.f32.partialorder %v54, 0.0
    %v71 = vand.u32 %v54, 2147483648
    %v72 = vsel %vm70, %v71, %v69
    %v73 = vrsqrt.pop %v56
    %v74 = vmul.f32 %v73, %v56
    %v75 = vmul.f32 %v74, %v73
    %v76 = vmul.f32 0.5, %v75
    %v77 = vsub.f32 1.5, %v76
    %v78 = vmul.f32 %v73, %v77
    %v79 = vmul.f32 %v56, %v78
    %vm80 = vcmp.eq.f32.partialorder %v56, inf
    %v81 = vsel %vm80, %v56, %v79
    %vm82 = vcmp.eq.f32.partialorder %v56, 0.0
    %v83 = vand.u32 %v56, 2147483648
    %v84 = vsel %vm82, %v83, %v81
    %v85 = vrsqrt.pop %v58
    %v86 = vmul.f32 %v85, %v58
    %v87 = vmul.f32 %v86, %v85
    %v88 = vmul.f32 0.5, %v87
    %v89 = vsub.f32 1.5, %v88
    %v90 = vmul.f32 %v85, %v89
    %v91 = vmul.f32 %v58, %v90
    %vm92 = vcmp.eq.f32.partialorder %v58, inf
    %v93 = vsel %vm92, %v58, %v91
    %vm94 = vcmp.eq.f32.partialorder %v58, 0.0
    %v95 = vand.u32 %v58, 2147483648
    %v96 = vsel %vm94, %v95, %v93
    %v97 = vrsqrt.pop %v60
    %v98 = vmul.f32 %v97, %v60
    %v99 = vmul.f32 %v98, %v97
    %v100 = vmul.f32 0.5, %v99
    %v101 = vsub.f32 1.5, %v100
    %v102 = vmul.f32 %v97, %v101
    %v103 = vmul.f32 %v60, %v102
    %vm104 = vcmp.eq.f32.partialorder %v60, inf
    %v105 = vsel %vm104, %v60, %v103
    %vm106 = vcmp.eq.f32.partialorder %v60, 0.0
    %v107 = vand.u32 %v60, 2147483648
    %v108 = vsel %vm106, %v107, %v105
    %v109 = vadd.f32 %v72, 1e-07
    %v110 = vadd.f32 %v84, 1e-07
    %v111 = vadd.f32 %v96, 1e-07
    %v112 = vadd.f32 %v108, 1e-07
    %v113 = vrcp.pop %v109
    %v114 = vrcp.pop %v110
    %v115 = vrcp.pop %v111
    %v116 = vrcp.pop %v112
    %vm117 = vcmp.gt.f32.partialorder %v72, 1.0
    %vm118 = vcmp.gt.f32.partialorder %v84, 1.0
    %vm119 = vcmp.gt.f32.partialorder %v96, 1.0
    %vm120 = vcmp.gt.f32.partialorder %v108, 1.0
    %v121 = vsel %vm117, %v113, 1.0
    %v122 = vsel %vm118, %v114, 1.0
    %v123 = vsel %vm119, %v115, 1.0
    %v124 = vsel %vm120, %v116, 1.0
    %v125 = vmul.f32 %v45, %v121
    %v126 = vmul.f32 %v46, %v122
    %v127 = vmul.f32 %v47, %v123
    %v128 = vmul.f32 %v48, %v124
    %v129 = vadd.f32 %v125, 0.0
    %v130 = vadd.f32 %v129, %v126
    %v131 = vadd.f32 %v130, %v127
    %v132 = vadd.f32 %v131, %v128
    %v133 = vmul.f32 %v132, 0.25
    %v134 = vpack.c.bf16 %v133, %v133
    %135 = vst [vmem:[#allocation8] sm:$0xf] %v134
    // Predicated region
    $region17: #{tpu_custom_call.1} parent=1 // pred_check
      _
    $region18: #{tpu_custom_call.1} parent=1 // pred_check_branch
      %137 = sbr.rel (0) target = $region20
    $region19: #{tpu_custom_call.1} parent=1 // pred_region
      %139 = vsyncadd [#allocation7], 0
      %s141 = sshll.u32 [#allocation8], 4
      %s142 = int_to_ptr.vmem [resolvable:$true] %s141
      %s143 = sshll.u32 %s2, 4
      %s144 = int_to_ptr.hbm [resolvable:$true] %s143
      %146 = dma.vmem_to_hbm [thread:$0]  %s142, 64, %s144, [#allocation7]
    $region20: #{tpu_custom_call.1} parent=1 // pred_fallthru
      _
    // Predicated region
    $region21: #{tpu_custom_call.1} parent=1 // pred_check
      _
    $region22: #{tpu_custom_call.1} parent=1 // pred_check_branch
      %148 = sbr.rel (0) target = $region24
    $region23: #{tpu_custom_call.1} parent=1 // pred_region
      %150 = dma.done [#allocation7], 64
    $region24: #{tpu_custom_call.1} parent=1 // pred_fallthru
      _
    %151 = vsyncpa [#allocation6], 1
    %152 = vsyncpa [#allocation7], 1

</llo_original>
